<compile_context>
chip_gen: v5e
topology: v5e:2x2
jax: 0.10.0
libtpu: 0.0.40
codegen_flags: <defaults>
</compile_context>

<pallas_src>
import jax
import jax.numpy as jnp
from jax.experimental import pallas as pl
from jax.experimental.pallas import tpu as pltpu  # noqa: F401  (kept for parity)
from jax.scipy.linalg import block_diag


# ----------------------------------------------------------------------------
# Kernel: single invocation, everything batched over types.
# ----------------------------------------------------------------------------
def _rec_kernel(lh_ref, ctx_ref,
                wc1_ref, bc1_ref, wc2_ref, bc2_ref,
                wg1_ref, bg1_ref, wg2_ref, bg2_ref,
                wmid_ref, bmid_ref, wctx_ref,
                whead_ref, bhead_ref,
                typeprob_ref, rec_ref, sf_ref):
    f32 = jnp.float32
    lh = lh_ref[...]                       # (B, D)
    ctx = ctx_ref[...]                     # (B, D)

    # ---- type classifier + softmax (computed once, unconditionally) ----
    h = jnp.maximum(
        jnp.dot(lh, wc1_ref[...], preferred_element_type=f32) + bc1_ref[...], 0.0)
    logits = jnp.dot(h, wc2_ref[...], preferred_element_type=f32) + bc2_ref[...]
    z = logits - jnp.max(logits, axis=-1, keepdims=True)
    e = jnp.exp(z)
    typeprob_ref[...] = e / jnp.sum(e, axis=-1, keepdims=True)      # (B, T)

    # ---- all T recommendation generators in one batched matmul pair ----
    # wg1_cat: (D, T*D)   wg2_bd: block-diag (T*D, T*M*R)
    g1 = jnp.maximum(
        jnp.dot(lh, wg1_ref[...], preferred_element_type=f32) + bg1_ref[...], 0.0)
    rec = jnp.dot(g1, wg2_ref[...], preferred_element_type=f32) + bg2_ref[...]
    rec_ref[...] = rec                                              # (B, T*M*R)

    # ---- fused scorer + feasibility hidden layer ----
    # w_mid = [ws1_blockdiag | wf1a_blockdiag]  -> mid = [sh | fh]
    # wctx  = [0 | tile(wf1b)] so the context term only hits the feas half.
    ctx_part = jnp.dot(ctx, wctx_ref[...], preferred_element_type=f32)
    mid = jnp.maximum(
        jnp.dot(rec, wmid_ref[...], preferred_element_type=f32)
        + ctx_part + bmid_ref[...], 0.0)                            # (B, T*M*RH + T*M*R)

    # ---- fused output heads: [scores | feasibility] in one matmul + sigmoid ----
    sf_ref[...] = jax.nn.sigmoid(
        jnp.dot(mid, whead_ref[...], preferred_element_type=f32) + bhead_ref[...])


# ----------------------------------------------------------------------------
# One-time weight packing (concat / block-diag / tile), outside the hot path.
# ----------------------------------------------------------------------------
def pack_params(params):
    T, D, _ = params["wg1"].shape
    M = params["max_per_type"]
    R = params["rec_dim"]
    RH = params["ws1"].shape[1]
    n = T * M

    # Per-type generators: concat layer-1 along out axis, block-diag layer-2.
    wg1_cat = jnp.concatenate([params["wg1"][i] for i in range(T)], axis=1)   # (D, T*D)
    bg1_cat = jnp.concatenate([params["bg1"][i] for i in range(T)], axis=1)   # (1, T*D)
    wg2_bd = block_diag(*[params["wg2"][i] for i in range(T)])                # (T*D, T*M*R)
    bg2_cat = jnp.concatenate([params["bg2"][i] for i in range(T)], axis=1)   # (1, T*M*R)

    # Scorer + feasibility hidden layers, fused side by side.
    ws1_bd = block_diag(*([params["ws1"]] * n))                               # (n*R, n*RH)
    wf1a_bd = block_diag(*([params["wf1a"]] * n))                             # (n*R, n*R)
    w_mid = jnp.concatenate([ws1_bd, wf1a_bd], axis=1)                        # (n*R, n*RH+n*R)
    b_mid = jnp.concatenate([jnp.tile(params["bs1"], (1, n)),
                             jnp.tile(params["bf1"], (1, n))], axis=1)        # (1, n*RH+n*R)
    # Context weight, tiled per item and zero-padded over the scorer half.
    wf1b_pad = jnp.concatenate([jnp.zeros((D, n * RH), jnp.float32),
                                jnp.tile(params["wf1b"], (1, n))], axis=1)    # (D, n*RH+n*R)

    # Output heads fused into one block-diag matmul -> [scores | feasibility].
    ws2_bd = block_diag(*([params["ws2"]] * n))                               # (n*RH, n)
    wf2_bd = block_diag(*([params["wf2"]] * n))                               # (n*R, n)
    w_head = block_diag(ws2_bd, wf2_bd)                                       # (n*RH+n*R, 2n)
    b_head = jnp.concatenate([jnp.tile(params["bs2"], (1, n)),
                              jnp.tile(params["bf2"], (1, n))], axis=1)       # (1, 2n)

    f32 = lambda a: a.astype(jnp.float32)
    return {
        "num_types": T, "max_per_type": M, "rec_dim": R,
        "wc1": f32(params["wc1"]), "bc1": f32(params["bc1"]),
        "wc2": f32(params["wc2"]), "bc2": f32(params["bc2"]),
        "wg1_cat": f32(wg1_cat), "bg1_cat": f32(bg1_cat),
        "wg2_bd": f32(wg2_bd), "bg2_cat": f32(bg2_cat),
        "w_mid": f32(w_mid), "b_mid": f32(b_mid), "wf1b_pad": f32(wf1b_pad),
        "w_head": f32(w_head), "b_head": f32(b_head),
    }


# ----------------------------------------------------------------------------
# Wrapper: single pallas_call, whole arrays in VMEM (no grid), free reshapes.
# ----------------------------------------------------------------------------
def recommendation_generator_forward(hidden_states, packed, battery_context=None):
    B, S, D = hidden_states.shape
    T = packed["num_types"]
    M = packed["max_per_type"]
    R = packed["rec_dim"]

    last_hidden = hidden_states[:, -1, :].astype(jnp.float32)
    ctx = last_hidden if battery_context is None else battery_context.astype(jnp.float32)

    out_shape = (
        jax.ShapeDtypeStruct((B, T), jnp.float32),            # type_probs
        jax.ShapeDtypeStruct((B, T * M * R), jnp.float32),    # recs, lane-dense flat
        jax.ShapeDtypeStruct((B, 2 * T * M), jnp.float32),    # [scores | feasibility]
    )

    type_probs, rec_flat, sf = pl.pallas_call(
        _rec_kernel,
        out_shape=out_shape,
    )(last_hidden, ctx,
      packed["wc1"], packed["bc1"], packed["wc2"], packed["bc2"],
      packed["wg1_cat"], packed["bg1_cat"], packed["wg2_bd"], packed["bg2_cat"],
      packed["w_mid"], packed["b_mid"], packed["wf1b_pad"],
      packed["w_head"], packed["b_head"])

    return {
        "recommendations": rec_flat.reshape(B, T, M, R),
        "type_probabilities": type_probs,
        "recommendation_scores": sf[:, : T * M].reshape(B, T, M),
        "feasibility_scores": sf[:, T * M:].reshape(B, T, M),
        "hidden_states": hidden_states,
    }


# ----------------------------------------------------------------------------
# Deterministic parameter init (synthetic; shapes follow the PyTorch __init__)
# ----------------------------------------------------------------------------
def make_params(key, d_model, rec_dim, num_types, max_per_type):
    ks = jax.random.split(key, 16)
    dh = d_model // 2
    rh = rec_dim // 2
    n = lambda k, shape, scale=0.1: (scale * jax.random.normal(k, shape)).astype(jnp.float32)
    params = {
        "rec_dim": rec_dim,
        "max_per_type": max_per_type,
        # type_classifier
        "wc1": n(ks[0], (d_model, dh)), "bc1": n(ks[1], (1, dh)),
        "wc2": n(ks[2], (dh, num_types)), "bc2": n(ks[3], (1, num_types)),
        # per-type generators (stacked on leading num_types axis)
        "wg1": n(ks[4], (num_types, d_model, d_model)),
        "bg1": n(ks[5], (num_types, 1, d_model)),
        "wg2": n(ks[6], (num_types, d_model, rec_dim * max_per_type)),
        "bg2": n(ks[7], (num_types, 1, rec_dim * max_per_type)),
        # scorer
        "ws1": n(ks[8], (rec_dim, rh)), "bs1": n(ks[9], (1, rh)),
        "ws2": n(ks[10], (rh, 1)), "bs2": n(ks[11], (1, 1)),
        # feasibility checker: Wf1 split into [rec part ; context part]
        "wf1a": n(ks[12], (rec_dim, rec_dim)),
        "wf1b": n(ks[13], (d_model, rec_dim)),
        "bf1": n(ks[14], (1, rec_dim)),
        "wf2": n(ks[15], (rec_dim, 1)),
        "bf2": jnp.zeros((1, 1), jnp.float32),
    }
    return params


# ----------------------------------------------------------------------------
# Pure-JAX reference (mirrors the PyTorch forward, eval mode)
# ----------------------------------------------------------------------------
def reference_forward(hidden_states, params, battery_context=None):
    B = hidden_states.shape[0]
    T = params["wg1"].shape[0]
    M = params["max_per_type"]
    R = params["rec_dim"]
    lh = hidden_states[:, -1, :].astype(jnp.float32)
    ctx = lh if battery_context is None else battery_context.astype(jnp.float32)

    h = jnp.maximum(lh @ params["wc1"] + params["bc1"], 0.0)
    logits = h @ params["wc2"] + params["bc2"]
    type_probs = jax.nn.softmax(logits, axis=-1)

    recs, scores, feas = [], [], []
    wf1 = jnp.concatenate([params["wf1a"], params["wf1b"]], axis=0)
    for i in range(T):
        g1 = jnp.maximum(lh @ params["wg1"][i] + params["bg1"][i], 0.0)
        rec = (g1 @ params["wg2"][i] + params["bg2"][i]).reshape(B, M, R)
        sh = jnp.maximum(rec @ params["ws1"] + params["bs1"], 0.0)
        s = jax.nn.sigmoid(sh @ params["ws2"] + params["bs2"])[..., 0]
        ctx_exp = jnp.broadcast_to(ctx[:, None, :], (B, M, ctx.shape[-1]))
        fin = jnp.concatenate([rec, ctx_exp], axis=-1)
        fh = jnp.maximum(fin @ wf1 + params["bf1"], 0.0)
        f = jax.nn.sigmoid(fh @ params["wf2"] + params["bf2"])[..., 0]
        recs.append(rec); scores.append(s); feas.append(f)
    return {
        "recommendations": jnp.stack(recs, axis=1),
        "type_probabilities": type_probs,
        "recommendation_scores": jnp.stack(scores, axis=1),
        "feasibility_scores": jnp.stack(feas, axis=1),
        "hidden_states": hidden_states,
    }


if __name__ == "__main__":
    B, S, D = 2, 8, 32
    REC_DIM, NUM_TYPES, MAX_PER_TYPE = 16, 4, 4

    key = jax.random.PRNGKey(0)
    k_p, k_x, k_c = jax.random.split(key, 3)
    params = make_params(k_p, D, REC_DIM, NUM_TYPES, MAX_PER_TYPE)
    packed = pack_params(params)
    hidden_states = jax.random.normal(k_x, (B, S, D), dtype=jnp.float32)
    battery_ctx = jax.random.normal(k_c, (B, D), dtype=jnp.float32)

    for bctx in (None, battery_ctx):
        out = recommendation_generator_forward(hidden_states, packed, battery_context=bctx)
        out = jax.tree_util.tree_map(jax.block_until_ready, out)
        ref = reference_forward(hidden_states, params, battery_context=bctx)
        for k in ["recommendations", "type_probabilities",
                  "recommendation_scores", "feasibility_scores"]:
            assert out[k].shape == ref[k].shape, (k, out[k].shape, ref[k].shape)
            assert jnp.allclose(out[k], ref[k], atol=1e-5, rtol=1e-5), f"mismatch in {k}"

    print("KERNEL_OK")
</pallas_src>

<mosaic_0001>
module attributes {stable_mosaic.version = 11 : i64} {
  func.func @_rec_kernel(%arg0: memref<2x32xf32, #tpu.memory_space<vmem>>, %arg1: memref<2x32xf32, #tpu.memory_space<vmem>>, %arg2: memref<32x16xf32, #tpu.memory_space<vmem>>, %arg3: memref<1x16xf32, #tpu.memory_space<vmem>>, %arg4: memref<16x4xf32, #tpu.memory_space<vmem>>, %arg5: memref<1x4xf32, #tpu.memory_space<vmem>>, %arg6: memref<32x128xf32, #tpu.memory_space<vmem>>, %arg7: memref<1x128xf32, #tpu.memory_space<vmem>>, %arg8: memref<128x256xf32, #tpu.memory_space<vmem>>, %arg9: memref<1x256xf32, #tpu.memory_space<vmem>>, %arg10: memref<256x384xf32, #tpu.memory_space<vmem>>, %arg11: memref<1x384xf32, #tpu.memory_space<vmem>>, %arg12: memref<32x384xf32, #tpu.memory_space<vmem>>, %arg13: memref<384x32xf32, #tpu.memory_space<vmem>>, %arg14: memref<1x32xf32, #tpu.memory_space<vmem>>, %arg15: memref<2x4xf32, #tpu.memory_space<vmem>>, %arg16: memref<2x256xf32, #tpu.memory_space<vmem>>, %arg17: memref<2x32xf32, #tpu.memory_space<vmem>>) attributes {dimension_semantics = [], scalar_prefetch = 0 : i64, scratch_operands = 0 : i64, tpu.core_type = #tpu.core_type<tc>} {
    %c0 = arith.constant 0 : index
    %c0_0 = arith.constant 0 : index
    %0 = vector.load %arg0[%c0, %c0_0] : memref<2x32xf32, #tpu.memory_space<vmem>>, vector<2x32xf32>
    %c0_1 = arith.constant 0 : index
    %c0_2 = arith.constant 0 : index
    %1 = vector.load %arg1[%c0_1, %c0_2] : memref<2x32xf32, #tpu.memory_space<vmem>>, vector<2x32xf32>
    %c0_3 = arith.constant 0 : index
    %c0_4 = arith.constant 0 : index
    %2 = vector.load %arg2[%c0_3, %c0_4] : memref<32x16xf32, #tpu.memory_space<vmem>>, vector<32x16xf32>
    %cst = arith.constant dense<0.000000e+00> : vector<2x16xf32>
    %3 = tpu.matmul %0, %2, %cst {dimension_numbers = #tpu.dot_dimension_numbers<[1], [0], [0], [1], [0, 0, 1, 1], [], []>} : vector<2x32xf32>, vector<32x16xf32>, vector<2x16xf32> -> vector<2x16xf32>
    %c0_5 = arith.constant 0 : index
    %c0_6 = arith.constant 0 : index
    %4 = vector.load %arg3[%c0_5, %c0_6] : memref<1x16xf32, #tpu.memory_space<vmem>>, vector<1x16xf32>
    %5 = vector.broadcast %4 : vector<1x16xf32> to vector<2x16xf32>
    %6 = arith.addf %3, %5 : vector<2x16xf32>
    %cst_7 = arith.constant 0.000000e+00 : f32
    %7 = vector.broadcast %cst_7 : f32 to vector<2x16xf32>
    %8 = arith.maximumf %6, %7 : vector<2x16xf32>
    %c0_8 = arith.constant 0 : index
    %c0_9 = arith.constant 0 : index
    %9 = vector.load %arg4[%c0_8, %c0_9] : memref<16x4xf32, #tpu.memory_space<vmem>>, vector<16x4xf32>
    %cst_10 = arith.constant dense<0.000000e+00> : vector<2x4xf32>
    %10 = tpu.matmul %8, %9, %cst_10 {dimension_numbers = #tpu.dot_dimension_numbers<[1], [0], [0], [1], [0, 0, 1, 1], [], []>} : vector<2x16xf32>, vector<16x4xf32>, vector<2x4xf32> -> vector<2x4xf32>
    %c0_11 = arith.constant 0 : index
    %c0_12 = arith.constant 0 : index
    %11 = vector.load %arg5[%c0_11, %c0_12] : memref<1x4xf32, #tpu.memory_space<vmem>>, vector<1x4xf32>
    %12 = vector.broadcast %11 : vector<1x4xf32> to vector<2x4xf32>
    %13 = arith.addf %10, %12 : vector<2x4xf32>
    %cst_13 = arith.constant dense<0xFF800000> : vector<2xf32>
    %14 = vector.multi_reduction <maximumf>, %13, %cst_13 [1] : vector<2x4xf32> to vector<2xf32>
    %15 = vector.shape_cast %14 : vector<2xf32> to vector<2x1xf32>
    %16 = vector.broadcast %15 : vector<2x1xf32> to vector<2x4xf32>
    %17 = arith.subf %13, %16 : vector<2x4xf32>
    %18 = math.exp %17 : vector<2x4xf32>
    %cst_14 = arith.constant dense<0.000000e+00> : vector<2xf32>
    %19 = vector.multi_reduction <add>, %18, %cst_14 [1] : vector<2x4xf32> to vector<2xf32>
    %20 = vector.shape_cast %19 : vector<2xf32> to vector<2x1xf32>
    %21 = vector.broadcast %20 : vector<2x1xf32> to vector<2x4xf32>
    %22 = arith.divf %18, %21 : vector<2x4xf32>
    %c0_15 = arith.constant 0 : index
    %c0_16 = arith.constant 0 : index
    %23 = vector.load %arg15[%c0_15, %c0_16] : memref<2x4xf32, #tpu.memory_space<vmem>>, vector<2x4xf32>
    tpu.vector_store %arg15[%c0_15, %c0_16], %22 {strides = array<i32>} : memref<2x4xf32, #tpu.memory_space<vmem>>, vector<2x4xf32>,
    %c0_17 = arith.constant 0 : index
    %c0_18 = arith.constant 0 : index
    %24 = vector.load %arg6[%c0_17, %c0_18] : memref<32x128xf32, #tpu.memory_space<vmem>>, vector<32x128xf32>
    %cst_19 = arith.constant dense<0.000000e+00> : vector<2x128xf32>
    %25 = tpu.matmul %0, %24, %cst_19 {dimension_numbers = #tpu.dot_dimension_numbers<[1], [0], [0], [1], [0, 0, 1, 1], [], []>} : vector<2x32xf32>, vector<32x128xf32>, vector<2x128xf32> -> vector<2x128xf32>
    %c0_20 = arith.constant 0 : index
    %c0_21 = arith.constant 0 : index
    %26 = vector.load %arg7[%c0_20, %c0_21] : memref<1x128xf32, #tpu.memory_space<vmem>>, vector<1x128xf32>
    %27 = vector.broadcast %26 : vector<1x128xf32> to vector<2x128xf32>
    %28 = arith.addf %25, %27 : vector<2x128xf32>
    %cst_22 = arith.constant 0.000000e+00 : f32
    %29 = vector.broadcast %cst_22 : f32 to vector<2x128xf32>
    %30 = arith.maximumf %28, %29 : vector<2x128xf32>
    %c0_23 = arith.constant 0 : index
    %c0_24 = arith.constant 0 : index
    %31 = vector.load %arg8[%c0_23, %c0_24] : memref<128x256xf32, #tpu.memory_space<vmem>>, vector<128x256xf32>
    %cst_25 = arith.constant dense<0.000000e+00> : vector<2x256xf32>
    %32 = tpu.matmul %30, %31, %cst_25 {dimension_numbers = #tpu.dot_dimension_numbers<[1], [0], [0], [1], [0, 0, 1, 1], [], []>} : vector<2x128xf32>, vector<128x256xf32>, vector<2x256xf32> -> vector<2x256xf32>
    %c0_26 = arith.constant 0 : index
    %c0_27 = arith.constant 0 : index
    %33 = vector.load %arg9[%c0_26, %c0_27] : memref<1x256xf32, #tpu.memory_space<vmem>>, vector<1x256xf32>
    %34 = vector.broadcast %33 : vector<1x256xf32> to vector<2x256xf32>
    %35 = arith.addf %32, %34 : vector<2x256xf32>
    %c0_28 = arith.constant 0 : index
    %c0_29 = arith.constant 0 : index
    %36 = vector.load %arg16[%c0_28, %c0_29] : memref<2x256xf32, #tpu.memory_space<vmem>>, vector<2x256xf32>
    tpu.vector_store %arg16[%c0_28, %c0_29], %35 {strides = array<i32>} : memref<2x256xf32, #tpu.memory_space<vmem>>, vector<2x256xf32>,
    %c0_30 = arith.constant 0 : index
    %c0_31 = arith.constant 0 : index
    %37 = vector.load %arg12[%c0_30, %c0_31] : memref<32x384xf32, #tpu.memory_space<vmem>>, vector<32x384xf32>
    %cst_32 = arith.constant dense<0.000000e+00> : vector<2x384xf32>
    %38 = tpu.matmul %1, %37, %cst_32 {dimension_numbers = #tpu.dot_dimension_numbers<[1], [0], [0], [1], [0, 0, 1, 1], [], []>} : vector<2x32xf32>, vector<32x384xf32>, vector<2x384xf32> -> vector<2x384xf32>
    %c0_33 = arith.constant 0 : index
    %c0_34 = arith.constant 0 : index
    %39 = vector.load %arg10[%c0_33, %c0_34] : memref<256x384xf32, #tpu.memory_space<vmem>>, vector<256x384xf32>
    %cst_35 = arith.constant dense<0.000000e+00> : vector<2x384xf32>
    %40 = tpu.matmul %35, %39, %cst_35 {dimension_numbers = #tpu.dot_dimension_numbers<[1], [0], [0], [1], [0, 0, 1, 1], [], []>} : vector<2x256xf32>, vector<256x384xf32>, vector<2x384xf32> -> vector<2x384xf32>
    %41 = arith.addf %40, %38 : vector<2x384xf32>
    %c0_36 = arith.constant 0 : index
    %c0_37 = arith.constant 0 : index
    %42 = vector.load %arg11[%c0_36, %c0_37] : memref<1x384xf32, #tpu.memory_space<vmem>>, vector<1x384xf32>
    %43 = vector.broadcast %42 : vector<1x384xf32> to vector<2x384xf32>
    %44 = arith.addf %41, %43 : vector<2x384xf32>
    %cst_38 = arith.constant 0.000000e+00 : f32
    %45 = vector.broadcast %cst_38 : f32 to vector<2x384xf32>
    %46 = arith.maximumf %44, %45 : vector<2x384xf32>
    %c0_39 = arith.constant 0 : index
    %c0_40 = arith.constant 0 : index
    %47 = vector.load %arg13[%c0_39, %c0_40] : memref<384x32xf32, #tpu.memory_space<vmem>>, vector<384x32xf32>
    %cst_41 = arith.constant dense<0.000000e+00> : vector<2x32xf32>
    %48 = tpu.matmul %46, %47, %cst_41 {dimension_numbers = #tpu.dot_dimension_numbers<[1], [0], [0], [1], [0, 0, 1, 1], [], []>} : vector<2x384xf32>, vector<384x32xf32>, vector<2x32xf32> -> vector<2x32xf32>
    %c0_42 = arith.constant 0 : index
    %c0_43 = arith.constant 0 : index
    %49 = vector.load %arg14[%c0_42, %c0_43] : memref<1x32xf32, #tpu.memory_space<vmem>>, vector<1x32xf32>
    %50 = vector.broadcast %49 : vector<1x32xf32> to vector<2x32xf32>
    %51 = arith.addf %48, %50 : vector<2x32xf32>
    %52 = arith.negf %51 : vector<2x32xf32>
    %53 = math.exp %52 : vector<2x32xf32>
    %cst_44 = arith.constant 1.000000e+00 : f32
    %54 = vector.broadcast %cst_44 : f32 to vector<2x32xf32>
    %55 = arith.addf %54, %53 : vector<2x32xf32>
    %56 = arith.divf %54, %55 : vector<2x32xf32>
    %c0_45 = arith.constant 0 : index
    %c0_46 = arith.constant 0 : index
    %57 = vector.load %arg17[%c0_45, %c0_46] : memref<2x32xf32, #tpu.memory_space<vmem>>, vector<2x32xf32>
    tpu.vector_store %arg17[%c0_45, %c0_46], %56 {strides = array<i32>} : memref<2x32xf32, #tpu.memory_space<vmem>>, vector<2x32xf32>,
    return
  }
}

</mosaic_0001>

<llo_original>
// kernel: tpu_custom_call.1
$region0: #{tpu_custom_call.1}
  #allocation0 [shape = 'u32[]', space=smem, size = 0x4, offset = 0x4, fixed_abs, tag = 'smem constant byte address 0x4 - core index']
  #allocation1 [shape = 'u32[72,128]{1,0:T(1,128)}', space=vmem, size = 0x9000, scoped, tag = 'internal scratch']
  %s0 = inlined_call_operand.vmem [shape: f32[2,32], index: 0, kind: input, shape index: {}]
  %s1 = inlined_call_operand.vmem [shape: f32[2,32], index: 1, kind: input, shape index: {}]
  %s2 = inlined_call_operand.vmem [shape: f32[32,16], index: 2, kind: input, shape index: {}]
  %s3 = inlined_call_operand.vmem [shape: f32[1,16], index: 3, kind: input, shape index: {}]
  %s4 = inlined_call_operand.vmem [shape: f32[16,4], index: 4, kind: input, shape index: {}]
  %s5 = inlined_call_operand.vmem [shape: f32[1,4], index: 5, kind: input, shape index: {}]
  %s6 = inlined_call_operand.vmem [shape: f32[32,128], index: 6, kind: input, shape index: {}]
  %s7 = inlined_call_operand.vmem [shape: f32[1,128], index: 7, kind: input, shape index: {}]
  %s8 = inlined_call_operand.vmem [shape: f32[128,256], index: 8, kind: input, shape index: {}]
  %s9 = inlined_call_operand.vmem [shape: f32[1,256], index: 9, kind: input, shape index: {}]
  %s10 = inlined_call_operand.hbm [shape: f32[256,384], index: 10, kind: input, shape index: {}]
  %s11 = inlined_call_operand.vmem [shape: f32[1,384], index: 11, kind: input, shape index: {}]
  %s12 = inlined_call_operand.vmem [shape: f32[32,384], index: 12, kind: input, shape index: {}]
  %s13 = inlined_call_operand.vmem [shape: f32[384,32], index: 13, kind: input, shape index: {}]
  %s14 = inlined_call_operand.vmem [shape: f32[1,32], index: 14, kind: input, shape index: {}]
  %s15 = inlined_call_operand.hbm [shape: f32[2,4], index: 15, kind: output, shape index: {0}]
  %s16 = inlined_call_operand.hbm [shape: f32[2,256], index: 16, kind: output, shape index: {1}]
  %s17 = inlined_call_operand.hbm [shape: f32[2,32], index: 17, kind: output, shape index: {2}]
  %18 = xla_tuple %s15, %s16, %s17
  %s19 = sld [smem:[#allocation0]]
  $region90: #{tpu_custom_call.1} parent=0
    _
  %s21 = ssub.s32 1, %s19
  %s22 = scalar_select 0, %s21, %s19
  $region1: #{tpu_custom_call.1} parent=0
    #allocation2 [shape = 'u8[393216]{0}', space=vmem, size = 0x60000, scoped, tag = 'input window, operand 10, single buffered']
    #allocation3 [shape = 's32[1]{0}', space=sflag, size = 0x4, scoped, tag = 'scoped memory for tpu_custom_call.1']
    #allocation4 [shape = 's32[1]{0}', space=sflag, size = 0x4, scoped, tag = 'scoped memory for tpu_custom_call.1']
    #allocation5 [shape = 'u8[1024]{0}', space=vmem, size = 0x400, scoped, tag = 'output window, operand 0, single buffered']
    #allocation6 [shape = 'u8[2048]{0}', space=vmem, size = 0x800, scoped, tag = 'output window, operand 1, single buffered']
    #allocation7 [shape = 's32[1]{0}', space=sflag, size = 0x4, scoped, tag = 'scoped memory for tpu_custom_call.1']
    #allocation8 [shape = 'u8[1024]{0}', space=vmem, size = 0x400, scoped, tag = 'output window, operand 2, single buffered']
    %23 = vsyncpa [#allocation3], 0
    %24 = vsyncpa [#allocation4], 0
    %25 = vsyncpa [#allocation7], 0
    // Predicated region
    $region2: #{tpu_custom_call.1} parent=1 // pred_check
      _
    $region3: #{tpu_custom_call.1} parent=1 // pred_check_branch
      %27 = sbr.rel (0) target = $region5
    $region4: #{tpu_custom_call.1} parent=1 // pred_region
      _
    $region5: #{tpu_custom_call.1} parent=1 // pred_fallthru
      _
    // Predicated region
    $region6: #{tpu_custom_call.1} parent=1 // pred_check
      _
    $region7: #{tpu_custom_call.1} parent=1 // pred_check_branch
      %29 = sbr.rel (0) target = $region9
    $region8: #{tpu_custom_call.1} parent=1 // pred_region
      _
    $region9: #{tpu_custom_call.1} parent=1 // pred_fallthru
      _
    // Predicated region
    $region10: #{tpu_custom_call.1} parent=1 // pred_check
      _
    $region11: #{tpu_custom_call.1} parent=1 // pred_check_branch
      %31 = sbr.rel (0) target = $region13
    $region12: #{tpu_custom_call.1} parent=1 // pred_region
      _
    $region13: #{tpu_custom_call.1} parent=1 // pred_fallthru
      _
    // Predicated region
    $region14: #{tpu_custom_call.1} parent=1 // pred_check
      _
    $region15: #{tpu_custom_call.1} parent=1 // pred_check_branch
      %33 = sbr.rel (0) target = $region17
    $region16: #{tpu_custom_call.1} parent=1 // pred_region
      _
    $region17: #{tpu_custom_call.1} parent=1 // pred_fallthru
      _
    // Predicated region
    $region18: #{tpu_custom_call.1} parent=1 // pred_check
      _
    $region19: #{tpu_custom_call.1} parent=1 // pred_check_branch
      %35 = sbr.rel (0) target = $region21
    $region20: #{tpu_custom_call.1} parent=1 // pred_region
      _
    $region21: #{tpu_custom_call.1} parent=1 // pred_fallthru
      _
    // Predicated region
    $region22: #{tpu_custom_call.1} parent=1 // pred_check
      _
    $region23: #{tpu_custom_call.1} parent=1 // pred_check_branch
      %37 = sbr.rel (0) target = $region25
    $region24: #{tpu_custom_call.1} parent=1 // pred_region
      _
    $region25: #{tpu_custom_call.1} parent=1 // pred_fallthru
      _
    // Predicated region
    $region26: #{tpu_custom_call.1} parent=1 // pred_check
      _
    $region27: #{tpu_custom_call.1} parent=1 // pred_check_branch
      %39 = sbr.rel (0) target = $region29
    $region28: #{tpu_custom_call.1} parent=1 // pred_region
      _
    $region29: #{tpu_custom_call.1} parent=1 // pred_fallthru
      _
    // Predicated region
    $region30: #{tpu_custom_call.1} parent=1 // pred_check
      _
    $region31: #{tpu_custom_call.1} parent=1 // pred_check_branch
      %41 = sbr.rel (0) target = $region33
    $region32: #{tpu_custom_call.1} parent=1 // pred_region
      _
    $region33: #{tpu_custom_call.1} parent=1 // pred_fallthru
      _
    // Predicated region
    $region34: #{tpu_custom_call.1} parent=1 // pred_check
      _
    $region35: #{tpu_custom_call.1} parent=1 // pred_check_branch
      %43 = sbr.rel (0) target = $region37
    $region36: #{tpu_custom_call.1} parent=1 // pred_region
      _
    $region37: #{tpu_custom_call.1} parent=1 // pred_fallthru
      _
    // Predicated region
    $region38: #{tpu_custom_call.1} parent=1 // pred_check
      _
    $region39: #{tpu_custom_call.1} parent=1 // pred_check_branch
      %45 = sbr.rel (0) target = $region41
    $region40: #{tpu_custom_call.1} parent=1 // pred_region
      _
    $region41: #{tpu_custom_call.1} parent=1 // pred_fallthru
      _
    // Predicated region
    $region42: #{tpu_custom_call.1} parent=1 // pred_check
      _
    $region43: #{tpu_custom_call.1} parent=1 // pred_check_branch
      %47 = sbr.rel (0) target = $region45
    $region44: #{tpu_custom_call.1} parent=1 // pred_region
      %49 = vsyncadd [#allocation3], 0
      %s50 = sshll.u32 %s10, 4
      %s51 = int_to_ptr.hbm [resolvable:$true] %s50
      %s52 = sshll.u32 [#allocation2], 4
      %s53 = int_to_ptr.vmem [resolvable:$true] %s52
      %58 = dma.hbm_to_vmem [thread:$0]  %s51, 12288, %s53, [#allocation3], 384, 384, 24
    $region45: #{tpu_custom_call.1} parent=1 // pred_fallthru
      _
    // Predicated region
    $region46: #{tpu_custom_call.1} parent=1 // pred_check
      _
    $region47: #{tpu_custom_call.1} parent=1 // pred_check_branch
      %60 = sbr.rel (0) target = $region49
    $region48: #{tpu_custom_call.1} parent=1 // pred_region
      _
    $region49: #{tpu_custom_call.1} parent=1 // pred_fallthru
      _
    // Predicated region
    $region50: #{tpu_custom_call.1} parent=1 // pred_check
      _
    $region51: #{tpu_custom_call.1} parent=1 // pred_check_branch
      %62 = sbr.rel (0) target = $region53
    $region52: #{tpu_custom_call.1} parent=1 // pred_region
      _
    $region53: #{tpu_custom_call.1} parent=1 // pred_fallthru
      _
    // Predicated region
    $region54: #{tpu_custom_call.1} parent=1 // pred_check
      _
    $region55: #{tpu_custom_call.1} parent=1 // pred_check_branch
      %64 = sbr.rel (0) target = $region57
    $region56: #{tpu_custom_call.1} parent=1 // pred_region
      _
    $region57: #{tpu_custom_call.1} parent=1 // pred_fallthru
      _
    // Predicated region
    $region58: #{tpu_custom_call.1} parent=1 // pred_check
      _
    $region59: #{tpu_custom_call.1} parent=1 // pred_check_branch
      %66 = sbr.rel (0) target = $region61
    $region60: #{tpu_custom_call.1} parent=1 // pred_region
      _
    $region61: #{tpu_custom_call.1} parent=1 // pred_fallthru
      _
    // Predicated region
    $region62: #{tpu_custom_call.1} parent=1 // pred_check
      _
    $region63: #{tpu_custom_call.1} parent=1 // pred_check_branch
      %68 = sbr.rel (0) target = $region65
    $region64: #{tpu_custom_call.1} parent=1 // pred_region
      %70 = dma.done [#allocation3], 12288
    $region65: #{tpu_custom_call.1} parent=1 // pred_fallthru
      _
    %v71 = vld [vmem:[%s0] sm:$0x3]
    %v72 = vld [vmem:[%s1] sm:$0x3]
    %v73 = vld [vmem:[%s2] sm:$0xff]
    %v74 = vld [vmem:[%s2 + $0x8] sm:$0xff]
    %v75 = vld [vmem:[%s2 + $0x10] sm:$0xff]
    %v76 = vld [vmem:[%s2 + $0x18] sm:$0xff]
    %v77 = vld [vmem:[%s3] sm:$0x1]
    %v79 = vperm.slane %v77, 0
    %vm81 = vcmask 261120
    %v83 = vsel %vm81, %v71, 0
    %85 = vmatpush.msra.mxu0 0.0
    %86 = vmatpush.msra.mxu0 0.0
    %87 = vmatpush.msra.mxu0 0.0
    %88 = vmatpush.msra.mxu0 0.0
    %89 = vmatpush.msra.mxu0 0.0
    %90 = vmatpush.msra.mxu0 0.0
    %91 = vmatpush.msra.mxu0 0.0
    %92 = vmatpush.msra.mxu0 0.0
    %93 = vmatpush.msra.mxu0 0.0
    %94 = vmatpush.msra.mxu0 0.0
    %95 = vmatpush.msra.mxu0 0.0
    %96 = vmatpush.msra.mxu0 0.0
    %97 = vmatpush.msra.mxu0 %v76
    %98 = vmatpush.msra.mxu0 %v75
    %99 = vmatpush.msra.mxu0 %v74
    %100 = vmatpush.msra.mxu0 %v73
    %101 = vmatmul.f32.gmra.mxu0 %v83
    %v102 = vpop.f32.mrf.mxu0
    %v103 = vadd.f32 %v79, %v102
    %104 = vdwg.mxu0
    %v105 = vmax.f32 %v103, 0.0
    %v106 = vld [vmem:[%s4] sm:$0xff]
    %v107 = vld [vmem:[%s4 + $0x8] sm:$0xff]
    %v108 = vld [vmem:[%s5] sm:$0x1]
    %v110 = vperm.slane %v108, 0
    %vm112 = vcmask 130048
    %v114 = vsel %vm112, %v105, 0
    %116 = vmatpush.msra.mxu0 0.0
    %117 = vmatpush.msra.mxu0 0.0
    %118 = vmatpush.msra.mxu0 0.0
    %119 = vmatpush.msra.mxu0 0.0
    %120 = vmatpush.msra.mxu0 0.0
    %121 = vmatpush.msra.mxu0 0.0
    %122 = vmatpush.msra.mxu0 0.0
    %123 = vmatpush.msra.mxu0 0.0
    %124 = vmatpush.msra.mxu0 0.0
    %125 = vmatpush.msra.mxu0 0.0
    %126 = vmatpush.msra.mxu0 0.0
    %127 = vmatpush.msra.mxu0 0.0
    %128 = vmatpush.msra.mxu0 0.0
    %129 = vmatpush.msra.mxu0 0.0
    %130 = vmatpush.msra.mxu0 %v107
    %131 = vmatpush.msra.mxu0 %v106
    %132 = vmatmul.f32.gmra.mxu0 %v114
    %v133 = vpop.f32.mrf.mxu0
    %v134 = vadd.f32 %v110, %v133
    %135 = vdwg.mxu0
    %vm136 = vcmask 25600
    %v137 = vsel %vm136, %v134, -inf
    %138 = vmax.xlane.f32.xlu0 %v137
    %v139 = vpop.xlane.xlu0 %138
    %v140 = vsub.f32 %v134, %v139
    %v141 = vmul.f32 %v140, 1.442695
    %v142 = vpow.pop %v141
    %v143 = vsel %vm136, %v142, 0.0
    %144 = vadd.xlane.f32.xlu0 %v143
    %v145 = vpop.xlane.xlu0 %144
    %v146 = vrcp.pop %v145
    %v147 = vmul.f32 %v145, %v146
    %v148 = vsub.f32 1.0, %v147
    %v149 = vmul.f32 %v146, %v148
    %v150 = vadd.f32 %v146, %v149
    %vm151 = vweird.f32 %v145
    %vm152 = vweird.f32 %v146
    %vm153 = vmor %vm151, %vm152
    %v154 = vsel %vm153, %v146, %v150
    %v155 = vand.u32 2147483647, %v145
    %vm156 = vcmp.eq.f32.partialorder %v155, 8.507059e+37
    %v157 = vand.u32 %v145, 2147483648
    %v158 = vor.u32 1.1754944e-38, %v157
    %v159 = vsel %vm156, %v158, %v154
    %v160 = vmul.f32 %v142, %v159
    %161 = vst.msk [vmem:[#allocation5] sm:$0x3] %vm136, %v160
    %v162 = vld [vmem:[%s6] sm:$0xff]
    %v163 = vld [vmem:[%s6 + $0x8] sm:$0xff]
    %v164 = vld [vmem:[%s6 + $0x10] sm:$0xff]
    %v165 = vld [vmem:[%s6 + $0x18] sm:$0xff]
    %v166 = vld [vmem:[%s7] sm:$0x1]
    %v168 = vperm.slane %v166, 0
    %170 = vmatpush.msra.mxu0 0.0
    %171 = vmatpush.msra.mxu0 0.0
    %172 = vmatpush.msra.mxu0 0.0
    %173 = vmatpush.msra.mxu0 0.0
    %174 = vmatpush.msra.mxu0 0.0
    %175 = vmatpush.msra.mxu0 0.0
    %176 = vmatpush.msra.mxu0 0.0
    %177 = vmatpush.msra.mxu0 0.0
    %178 = vmatpush.msra.mxu0 0.0
    %179 = vmatpush.msra.mxu0 0.0
    %180 = vmatpush.msra.mxu0 0.0
    %181 = vmatpush.msra.mxu0 0.0
    %182 = vmatpush.msra.mxu0 %v165
    %183 = vmatpush.msra.mxu0 %v164
    %184 = vmatpush.msra.mxu0 %v163
    %185 = vmatpush.msra.mxu0 %v162
    %186 = vmatmul.f32.gmra.mxu0 %v83
    %v187 = vpop.f32.mrf.mxu0
    %v188 = vadd.f32 %v168, %v187
    %189 = vdwg.mxu0
    %v190 = vmax.f32 %v188, 0.0
    %v191 = vld [vmem:[%s8] sm:$0xff]
    %v192 = vld [vmem:[%s8 + $0x8] sm:$0xff]
    %v193 = vld [vmem:[%s8 + $0x10] sm:$0xff]
    %v194 = vld [vmem:[%s8 + $0x18] sm:$0xff]
    %v195 = vld [vmem:[%s8 + $0x20] sm:$0xff]
    %v196 = vld [vmem:[%s8 + $0x28] sm:$0xff]
    %v197 = vld [vmem:[%s8 + $0x30] sm:$0xff]
    %v198 = vld [vmem:[%s8 + $0x38] sm:$0xff]
    %v199 = vld [vmem:[%s8 + $0x40] sm:$0xff]
    %v200 = vld [vmem:[%s8 + $0x48] sm:$0xff]
    %v201 = vld [vmem:[%s8 + $0x50] sm:$0xff]
    %v202 = vld [vmem:[%s8 + $0x58] sm:$0xff]
    %v203 = vld [vmem:[%s8 + $0x60] sm:$0xff]
    %v204 = vld [vmem:[%s8 + $0x68] sm:$0xff]
    %v205 = vld [vmem:[%s8 + $0x70] sm:$0xff]
    %v206 = vld [vmem:[%s8 + $0x78] sm:$0xff]
    %v207 = vld [vmem:[%s8 + $0x80] sm:$0xff]
    %v208 = vld [vmem:[%s8 + $0x88] sm:$0xff]
    %v209 = vld [vmem:[%s8 + $0x90] sm:$0xff]
    %v210 = vld [vmem:[%s8 + $0x98] sm:$0xff]
    %v211 = vld [vmem:[%s8 + $0xa0] sm:$0xff]
    %v212 = vld [vmem:[%s8 + $0xa8] sm:$0xff]
    %v213 = vld [vmem:[%s8 + $0xb0] sm:$0xff]
    %v214 = vld [vmem:[%s8 + $0xb8] sm:$0xff]
    %v215 = vld [vmem:[%s8 + $0xc0] sm:$0xff]
    %v216 = vld [vmem:[%s8 + $0xc8] sm:$0xff]
    %v217 = vld [vmem:[%s8 + $0xd0] sm:$0xff]
    %v218 = vld [vmem:[%s8 + $0xd8] sm:$0xff]
    %v219 = vld [vmem:[%s8 + $0xe0] sm:$0xff]
    %v220 = vld [vmem:[%s8 + $0xe8] sm:$0xff]
    %v221 = vld [vmem:[%s8 + $0xf0] sm:$0xff]
    %v222 = vld [vmem:[%s8 + $0xf8] sm:$0xff]
    %v223 = vld [vmem:[%s9] sm:$0x3]
    %v225 = vperm.slane %v223, 0
    %v226 = vperm.slane %v223, 1
    %229 = vmatpush.msra.mxu0 %v221
    %230 = vmatpush.msra.mxu0 %v219
    %231 = vmatpush.msra.mxu0 %v217
    %232 = vmatpush.msra.mxu0 %v215
    %233 = vmatpush.msra.mxu0 %v213
    %234 = vmatpush.msra.mxu0 %v211
    %235 = vmatpush.msra.mxu0 %v209
    %236 = vmatpush.msra.mxu0 %v207
    %237 = vmatpush.msra.mxu0 %v205
    %238 = vmatpush.msra.mxu0 %v203
    %239 = vmatpush.msra.mxu0 %v201
    %240 = vmatpush.msra.mxu0 %v199
    %241 = vmatpush.msra.mxu0 %v197
    %242 = vmatpush.msra.mxu0 %v195
    %243 = vmatpush.msra.mxu0 %v193
    %244 = vmatpush.msra.mxu0 %v191
    %245 = vmatmul.f32.gmra.mxu0 %v190
    %v246 = vpop.f32.mrf.mxu0
    %v247 = vadd.f32 %v225, %v246
    %248 = vdwg.mxu0
    %249 = vmatpush.msra.mxu0 %v222
    %250 = vmatpush.msra.mxu0 %v220
    %251 = vmatpush.msra.mxu0 %v218
    %252 = vmatpush.msra.mxu0 %v216
    %253 = vmatpush.msra.mxu0 %v214
    %254 = vmatpush.msra.mxu0 %v212
    %255 = vmatpush.msra.mxu0 %v210
    %256 = vmatpush.msra.mxu0 %v208
    %257 = vmatpush.msra.mxu0 %v206
    %258 = vmatpush.msra.mxu0 %v204
    %259 = vmatpush.msra.mxu0 %v202
    %260 = vmatpush.msra.mxu0 %v200
    %261 = vmatpush.msra.mxu0 %v198
    %262 = vmatpush.msra.mxu0 %v196
    %263 = vmatpush.msra.mxu0 %v194
    %264 = vmatpush.msra.mxu0 %v192
    %265 = vmatmul.f32.gmra.mxu0 %v190
    %v266 = vpop.f32.mrf.mxu0
    %v267 = vadd.f32 %v226, %v266
    %268 = vdwg.mxu0
    %v271 = vrot.slane %v267, 6
    %vm272 = vcmask 1041408
    %v273 = vsel %vm272, %v247, %v271
    %275 = vst [vmem:[#allocation6] sm:$0xf] %v273
    %v276 = vld [vmem:[%s12] sm:$0xff]
    %v277 = vld [vmem:[%s12 + $0x8] sm:$0xff]
    %v278 = vld [vmem:[%s12 + $0x10] sm:$0xff]
    %v279 = vld [vmem:[%s12 + $0x18] sm:$0xff]
    %v280 = vld [vmem:[%s12 + $0x20] sm:$0xff]
    %v281 = vld [vmem:[%s12 + $0x28] sm:$0xff]
    %v282 = vld [vmem:[%s12 + $0x30] sm:$0xff]
    %v283 = vld [vmem:[%s12 + $0x38] sm:$0xff]
    %v284 = vld [vmem:[%s12 + $0x40] sm:$0xff]
    %v285 = vld [vmem:[%s12 + $0x48] sm:$0xff]
    %v286 = vld [vmem:[%s12 + $0x50] sm:$0xff]
    %v287 = vld [vmem:[%s12 + $0x58] sm:$0xff]
    %v289 = vsel %vm81, %v72, 0
    %291 = vmatpush.msra.mxu0 0.0
    %292 = vmatpush.msra.mxu0 0.0
    %293 = vmatpush.msra.mxu0 0.0
    %294 = vmatpush.msra.mxu0 0.0
    %295 = vmatpush.msra.mxu0 0.0
    %296 = vmatpush.msra.mxu0 0.0
    %297 = vmatpush.msra.mxu0 0.0
    %298 = vmatpush.msra.mxu0 0.0
    %299 = vmatpush.msra.mxu0 0.0
    %300 = vmatpush.msra.mxu0 0.0
    %301 = vmatpush.msra.mxu0 0.0
    %302 = vmatpush.msra.mxu0 0.0
    %303 = vmatpush.msra.mxu0 %v285
    %304 = vmatpush.msra.mxu0 %v282
    %305 = vmatpush.msra.mxu0 %v279
    %306 = vmatpush.msra.mxu0 %v276
    %307 = vmatmul.f32.gmra.mxu0 %v289
    %v308 = vpop.f32.mrf.mxu0
    %v309 = vadd.f32 0.0, %v308
    %310 = vdwg.mxu0
    %311 = vmatpush.msra.mxu0 0.0
    %312 = vmatpush.msra.mxu0 0.0
    %313 = vmatpush.msra.mxu0 0.0
    %314 = vmatpush.msra.mxu0 0.0
    %315 = vmatpush.msra.mxu0 0.0
    %316 = vmatpush.msra.mxu0 0.0
    %317 = vmatpush.msra.mxu0 0.0
    %318 = vmatpush.msra.mxu0 0.0
    %319 = vmatpush.msra.mxu0 0.0
    %320 = vmatpush.msra.mxu0 0.0
    %321 = vmatpush.msra.mxu0 0.0
    %322 = vmatpush.msra.mxu0 0.0
    %323 = vmatpush.msra.mxu0 %v286
    %324 = vmatpush.msra.mxu0 %v283
    %325 = vmatpush.msra.mxu0 %v280
    %326 = vmatpush.msra.mxu0 %v277
    %327 = vmatmul.f32.gmra.mxu0 %v289
    %v328 = vpop.f32.mrf.mxu0
    %v329 = vadd.f32 0.0, %v328
    %330 = vdwg.mxu0
    %331 = vmatpush.msra.mxu0 0.0
    %332 = vmatpush.msra.mxu0 0.0
    %333 = vmatpush.msra.mxu0 0.0
    %334 = vmatpush.msra.mxu0 0.0
    %335 = vmatpush.msra.mxu0 0.0
    %336 = vmatpush.msra.mxu0 0.0
    %337 = vmatpush.msra.mxu0 0.0
    %338 = vmatpush.msra.mxu0 0.0
    %339 = vmatpush.msra.mxu0 0.0
    %340 = vmatpush.msra.mxu0 0.0
    %341 = vmatpush.msra.mxu0 0.0
    %342 = vmatpush.msra.mxu0 0.0
    %343 = vmatpush.msra.mxu0 %v287
    %344 = vmatpush.msra.mxu0 %v284
    %345 = vmatpush.msra.mxu0 %v281
    %346 = vmatpush.msra.mxu0 %v278
    %347 = vmatmul.f32.gmra.mxu0 %v289
    %v348 = vpop.f32.mrf.mxu0
    %v349 = vadd.f32 0.0, %v348
    %350 = vdwg.mxu0
    %v351 = vld [vmem:[#allocation2] sm:$0xff]
    %v352 = vld [vmem:[#allocation2 + $0x8] sm:$0xff]
    %v353 = vld [vmem:[#allocation2 + $0x10] sm:$0xff]
    %v354 = vld [vmem:[#allocation2 + $0x18] sm:$0xff]
    %v355 = vld [vmem:[#allocation2 + $0x20] sm:$0xff]
    %v356 = vld [vmem:[#allocation2 + $0x28] sm:$0xff]
    %v357 = vld [vmem:[#allocation2 + $0x30] sm:$0xff]
    %v358 = vld [vmem:[#allocation2 + $0x38] sm:$0xff]
    %v359 = vld [vmem:[#allocation2 + $0x40] sm:$0xff]
    %v360 = vld [vmem:[#allocation2 + $0x48] sm:$0xff]
    %v361 = vld [vmem:[#allocation2 + $0x50] sm:$0xff]
    %v362 = vld [vmem:[#allocation2 + $0x58] sm:$0xff]
    %v363 = vld [vmem:[#allocation2 + $0x60] sm:$0xff]
    %v364 = vld [vmem:[#allocation2 + $0x68] sm:$0xff]
    %v365 = vld [vmem:[#allocation2 + $0x70] sm:$0xff]
    %v366 = vld [vmem:[#allocation2 + $0x78] sm:$0xff]
    %v367 = vld [vmem:[#allocation2 + $0x80] sm:$0xff]
    %v368 = vld [vmem:[#allocation2 + $0x88] sm:$0xff]
    %v369 = vld [vmem:[#allocation2 + $0x90] sm:$0xff]
    %v370 = vld [vmem:[#allocation2 + $0x98] sm:$0xff]
    %v371 = vld [vmem:[#allocation2 + $0xa0] sm:$0xff]
    %v372 = vld [vmem:[#allocation2 + $0xa8] sm:$0xff]
    %v373 = vld [vmem:[#allocation2 + $0xb0] sm:$0xff]
    %v374 = vld [vmem:[#allocation2 + $0xb8] sm:$0xff]
    %v375 = vld [vmem:[#allocation2 + $0xc0] sm:$0xff]
    %v376 = vld [vmem:[#allocation2 + $0xc8] sm:$0xff]
    %v377 = vld [vmem:[#allocation2 + $0xd0] sm:$0xff]
    %v378 = vld [vmem:[#allocation2 + $0xd8] sm:$0xff]
    %v379 = vld [vmem:[#allocation2 + $0xe0] sm:$0xff]
    %v380 = vld [vmem:[#allocation2 + $0xe8] sm:$0xff]
    %v381 = vld [vmem:[#allocation2 + $0xf0] sm:$0xff]
    %v382 = vld [vmem:[#allocation2 + $0xf8] sm:$0xff]
    %v383 = vld [vmem:[#allocation2 + $0x100] sm:$0xff]
    %v384 = vld [vmem:[#allocation2 + $0x108] sm:$0xff]
    %v385 = vld [vmem:[#allocation2 + $0x110] sm:$0xff]
    %v386 = vld [vmem:[#allocation2 + $0x118] sm:$0xff]
    %v387 = vld [vmem:[#allocation2 + $0x120] sm:$0xff]
    %v388 = vld [vmem:[#allocation2 + $0x128] sm:$0xff]
    %v389 = vld [vmem:[#allocation2 + $0x130] sm:$0xff]
    %v390 = vld [vmem:[#allocation2 + $0x138] sm:$0xff]
    %v391 = vld [vmem:[#allocation2 + $0x140] sm:$0xff]
    %v392 = vld [vmem:[#allocation2 + $0x148] sm:$0xff]
    %v393 = vld [vmem:[#allocation2 + $0x150] sm:$0xff]
    %v394 = vld [vmem:[#allocation2 + $0x158] sm:$0xff]
    %v395 = vld [vmem:[#allocation2 + $0x160] sm:$0xff]
    %v396 = vld [vmem:[#allocation2 + $0x168] sm:$0xff]
    %v397 = vld [vmem:[#allocation2 + $0x170] sm:$0xff]
    %v398 = vld [vmem:[#allocation2 + $0x178] sm:$0xff]
    %v399 = vld [vmem:[#allocation2 + $0x180] sm:$0xff]
    %v400 = vld [vmem:[#allocation2 + $0x188] sm:$0xff]
    %v401 = vld [vmem:[#allocation2 + $0x190] sm:$0xff]
    %v402 = vld [vmem:[#allocation2 + $0x198] sm:$0xff]
    %v403 = vld [vmem:[#allocation2 + $0x1a0] sm:$0xff]
    %v404 = vld [vmem:[#allocation2 + $0x1a8] sm:$0xff]
    %v405 = vld [vmem:[#allocation2 + $0x1b0] sm:$0xff]
    %v406 = vld [vmem:[#allocation2 + $0x1b8] sm:$0xff]
    %v407 = vld [vmem:[#allocation2 + $0x1c0] sm:$0xff]
    %v408 = vld [vmem:[#allocation2 + $0x1c8] sm:$0xff]
    %v409 = vld [vmem:[#allocation2 + $0x1d0] sm:$0xff]
    %v410 = vld [vmem:[#allocation2 + $0x1d8] sm:$0xff]
    %v411 = vld [vmem:[#allocation2 + $0x1e0] sm:$0xff]
    %v412 = vld [vmem:[#allocation2 + $0x1e8] sm:$0xff]
    %v413 = vld [vmem:[#allocation2 + $0x1f0] sm:$0xff]
    %v414 = vld [vmem:[#allocation2 + $0x1f8] sm:$0xff]
    %v415 = vld [vmem:[#allocation2 + $0x200] sm:$0xff]
    %v416 = vld [vmem:[#allocation2 + $0x208] sm:$0xff]
    %v417 = vld [vmem:[#allocation2 + $0x210] sm:$0xff]
    %v418 = vld [vmem:[#allocation2 + $0x218] sm:$0xff]
    %v419 = vld [vmem:[#allocation2 + $0x220] sm:$0xff]
    %v420 = vld [vmem:[#allocation2 + $0x228] sm:$0xff]
    %v421 = vld [vmem:[#allocation2 + $0x230] sm:$0xff]
    %v422 = vld [vmem:[#allocation2 + $0x238] sm:$0xff]
    %v423 = vld [vmem:[#allocation2 + $0x240] sm:$0xff]
    %v424 = vld [vmem:[#allocation2 + $0x248] sm:$0xff]
    %v425 = vld [vmem:[#allocation2 + $0x250] sm:$0xff]
    %v426 = vld [vmem:[#allocation2 + $0x258] sm:$0xff]
    %v427 = vld [vmem:[#allocation2 + $0x260] sm:$0xff]
    %v428 = vld [vmem:[#allocation2 + $0x268] sm:$0xff]
    %v429 = vld [vmem:[#allocation2 + $0x270] sm:$0xff]
    %v430 = vld [vmem:[#allocation2 + $0x278] sm:$0xff]
    %v431 = vld [vmem:[#allocation2 + $0x280] sm:$0xff]
    %v432 = vld [vmem:[#allocation2 + $0x288] sm:$0xff]
    %v433 = vld [vmem:[#allocation2 + $0x290] sm:$0xff]
    %v434 = vld [vmem:[#allocation2 + $0x298] sm:$0xff]
    %v435 = vld [vmem:[#allocation2 + $0x2a0] sm:$0xff]
    %v436 = vld [vmem:[#allocation2 + $0x2a8] sm:$0xff]
    %v437 = vld [vmem:[#allocation2 + $0x2b0] sm:$0xff]
    %v438 = vld [vmem:[#allocation2 + $0x2b8] sm:$0xff]
    %v439 = vld [vmem:[#allocation2 + $0x2c0] sm:$0xff]
    %v440 = vld [vmem:[#allocation2 + $0x2c8] sm:$0xff]
    %v441 = vld [vmem:[#allocation2 + $0x2d0] sm:$0xff]
    %v442 = vld [vmem:[#allocation2 + $0x2d8] sm:$0xff]
    %v443 = vld [vmem:[#allocation2 + $0x2e0] sm:$0xff]
    %v444 = vld [vmem:[#allocation2 + $0x2e8] sm:$0xff]
    %v445 = vld [vmem:[#allocation2 + $0x2f0] sm:$0xff]
    %v446 = vld [vmem:[#allocation2 + $0x2f8] sm:$0xff]
    %447 = vmatpush.msra.mxu0 %v396
    %448 = vmatpush.msra.mxu0 %v393
    %449 = vmatpush.msra.mxu0 %v390
    %450 = vmatpush.msra.mxu0 %v387
    %451 = vmatpush.msra.mxu0 %v384
    %452 = vmatpush.msra.mxu0 %v381
    %453 = vmatpush.msra.mxu0 %v378
    %454 = vmatpush.msra.mxu0 %v375
    %455 = vmatpush.msra.mxu0 %v372
    %456 = vmatpush.msra.mxu0 %v369
    %457 = vmatpush.msra.mxu0 %v366
    %458 = vmatpush.msra.mxu0 %v363
    %459 = vmatpush.msra.mxu0 %v360
    %460 = vmatpush.msra.mxu0 %v357
    %461 = vmatpush.msra.mxu0 %v354
    %462 = vmatpush.msra.mxu0 %v351
    %463 = vmatmul.f32.gmra.mxu0 %v247
    %v464 = vpop.f32.mrf.mxu0
    %v465 = vadd.f32 %v309, %v464
    %466 = vdwg.mxu0
    %467 = vmatpush.msra.mxu0 %v444
    %468 = vmatpush.msra.mxu0 %v441
    %469 = vmatpush.msra.mxu0 %v438
    %470 = vmatpush.msra.mxu0 %v435
    %471 = vmatpush.msra.mxu0 %v432
    %472 = vmatpush.msra.mxu0 %v429
    %473 = vmatpush.msra.mxu0 %v426
    %474 = vmatpush.msra.mxu0 %v423
    %475 = vmatpush.msra.mxu0 %v420
    %476 = vmatpush.msra.mxu0 %v417
    %477 = vmatpush.msra.mxu0 %v414
    %478 = vmatpush.msra.mxu0 %v411
    %479 = vmatpush.msra.mxu0 %v408
    %480 = vmatpush.msra.mxu0 %v405
    %481 = vmatpush.msra.mxu0 %v402
    %482 = vmatpush.msra.mxu0 %v399
    %483 = vmatmul.f32.gmra.mxu0 %v267
    %v484 = vpop.f32.mrf.mxu0
    %v485 = vadd.f32 %v465, %v484
    %486 = vdwg.mxu0
    %487 = vmatpush.msra.mxu0 %v397
    %488 = vmatpush.msra.mxu0 %v394
    %489 = vmatpush.msra.mxu0 %v391
    %490 = vmatpush.msra.mxu0 %v388
    %491 = vmatpush.msra.mxu0 %v385
    %492 = vmatpush.msra.mxu0 %v382
    %493 = vmatpush.msra.mxu0 %v379
    %494 = vmatpush.msra.mxu0 %v376
    %495 = vmatpush.msra.mxu0 %v373
    %496 = vmatpush.msra.mxu0 %v370
    %497 = vmatpush.msra.mxu0 %v367
    %498 = vmatpush.msra.mxu0 %v364
    %499 = vmatpush.msra.mxu0 %v361
    %500 = vmatpush.msra.mxu0 %v358
    %501 = vmatpush.msra.mxu0 %v355
    %502 = vmatpush.msra.mxu0 %v352
    %503 = vmatmul.f32.gmra.mxu0 %v247
    %v504 = vpop.f32.mrf.mxu0
    %v505 = vadd.f32 %v329, %v504
    %506 = vdwg.mxu0
    %507 = vmatpush.msra.mxu0 %v445
    %508 = vmatpush.msra.mxu0 %v442
    %509 = vmatpush.msra.mxu0 %v439
    %510 = vmatpush.msra.mxu0 %v436
    %511 = vmatpush.msra.mxu0 %v433
    %512 = vmatpush.msra.mxu0 %v430
    %513 = vmatpush.msra.mxu0 %v427
    %514 = vmatpush.msra.mxu0 %v424
    %515 = vmatpush.msra.mxu0 %v421
    %516 = vmatpush.msra.mxu0 %v418
    %517 = vmatpush.msra.mxu0 %v415
    %518 = vmatpush.msra.mxu0 %v412
    %519 = vmatpush.msra.mxu0 %v409
    %520 = vmatpush.msra.mxu0 %v406
    %521 = vmatpush.msra.mxu0 %v403
    %522 = vmatpush.msra.mxu0 %v400
    %523 = vmatmul.f32.gmra.mxu0 %v267
    %v524 = vpop.f32.mrf.mxu0
    %v525 = vadd.f32 %v505, %v524
    %526 = vdwg.mxu0
    %527 = vmatpush.msra.mxu0 %v398
    %528 = vmatpush.msra.mxu0 %v395
    %529 = vmatpush.msra.mxu0 %v392
    %530 = vmatpush.msra.mxu0 %v389
    %531 = vmatpush.msra.mxu0 %v386
    %532 = vmatpush.msra.mxu0 %v383
    %533 = vmatpush.msra.mxu0 %v380
    %534 = vmatpush.msra.mxu0 %v377
    %535 = vmatpush.msra.mxu0 %v374
    %536 = vmatpush.msra.mxu0 %v371
    %537 = vmatpush.msra.mxu0 %v368
    %538 = vmatpush.msra.mxu0 %v365
    %539 = vmatpush.msra.mxu0 %v362
    %540 = vmatpush.msra.mxu0 %v359
    %541 = vmatpush.msra.mxu0 %v356
    %542 = vmatpush.msra.mxu0 %v353
    %543 = vmatmul.f32.gmra.mxu0 %v247
    %v544 = vpop.f32.mrf.mxu0
    %v545 = vadd.f32 %v349, %v544
    %546 = vdwg.mxu0
    %547 = vmatpush.msra.mxu0 %v446
    %548 = vmatpush.msra.mxu0 %v443
    %549 = vmatpush.msra.mxu0 %v440
    %550 = vmatpush.msra.mxu0 %v437
    %551 = vmatpush.msra.mxu0 %v434
    %552 = vmatpush.msra.mxu0 %v431
    %553 = vmatpush.msra.mxu0 %v428
    %554 = vmatpush.msra.mxu0 %v425
    %555 = vmatpush.msra.mxu0 %v422
    %556 = vmatpush.msra.mxu0 %v419
    %557 = vmatpush.msra.mxu0 %v416
    %558 = vmatpush.msra.mxu0 %v413
    %559 = vmatpush.msra.mxu0 %v410
    %560 = vmatpush.msra.mxu0 %v407
    %561 = vmatpush.msra.mxu0 %v404
    %562 = vmatpush.msra.mxu0 %v401
    %563 = vmatmul.f32.gmra.mxu0 %v267
    %v564 = vpop.f32.mrf.mxu0
    %v565 = vadd.f32 %v545, %v564
    %566 = vdwg.mxu0
    %v567 = vld [vmem:[%s11] sm:$0x7]
    %v569 = vperm.slane %v567, 0
    %v570 = vperm.slane %v567, 1
    %v571 = vperm.slane %v567, 2
    %v575 = vadd.f32 %v485, %v569
    %v576 = vadd.f32 %v525, %v570
    %v577 = vadd.f32 %v565, %v571
    %v578 = vmax.f32 %v575, 0.0
    %v579 = vmax.f32 %v576, 0.0
    %v580 = vmax.f32 %v577, 0.0
    %v581 = vld [vmem:[%s13] sm:$0xff]
    %v582 = vld [vmem:[%s13 + $0x8] sm:$0xff]
    %v583 = vld [vmem:[%s13 + $0x10] sm:$0xff]
    %v584 = vld [vmem:[%s13 + $0x18] sm:$0xff]
    %v585 = vld [vmem:[%s13 + $0x20] sm:$0xff]
    %v586 = vld [vmem:[%s13 + $0x28] sm:$0xff]
    %v587 = vld [vmem:[%s13 + $0x30] sm:$0xff]
    %v588 = vld [vmem:[%s13 + $0x38] sm:$0xff]
    %v589 = vld [vmem:[%s13 + $0x40] sm:$0xff]
    %v590 = vld [vmem:[%s13 + $0x48] sm:$0xff]
    %v591 = vld [vmem:[%s13 + $0x50] sm:$0xff]
    %v592 = vld [vmem:[%s13 + $0x58] sm:$0xff]
    %v593 = vld [vmem:[%s13 + $0x60] sm:$0xff]
    %v594 = vld [vmem:[%s13 + $0x68] sm:$0xff]
    %v595 = vld [vmem:[%s13 + $0x70] sm:$0xff]
    %v596 = vld [vmem:[%s13 + $0x78] sm:$0xff]
    %v597 = vld [vmem:[%s13 + $0x80] sm:$0xff]
    %v598 = vld [vmem:[%s13 + $0x88] sm:$0xff]
    %v599 = vld [vmem:[%s13 + $0x90] sm:$0xff]
    %v600 = vld [vmem:[%s13 + $0x98] sm:$0xff]
    %v601 = vld [vmem:[%s13 + $0xa0] sm:$0xff]
    %v602 = vld [vmem:[%s13 + $0xa8] sm:$0xff]
    %v603 = vld [vmem:[%s13 + $0xb0] sm:$0xff]
    %v604 = vld [vmem:[%s13 + $0xb8] sm:$0xff]
    %v605 = vld [vmem:[%s13 + $0xc0] sm:$0xff]
    %v606 = vld [vmem:[%s13 + $0xc8] sm:$0xff]
    %v607 = vld [vmem:[%s13 + $0xd0] sm:$0xff]
    %v608 = vld [vmem:[%s13 + $0xd8] sm:$0xff]
    %v609 = vld [vmem:[%s13 + $0xe0] sm:$0xff]
    %v610 = vld [vmem:[%s13 + $0xe8] sm:$0xff]
    %v611 = vld [vmem:[%s13 + $0xf0] sm:$0xff]
    %v612 = vld [vmem:[%s13 + $0xf8] sm:$0xff]
    %v613 = vld [vmem:[%s13 + $0x100] sm:$0xff]
    %v614 = vld [vmem:[%s13 + $0x108] sm:$0xff]
    %v615 = vld [vmem:[%s13 + $0x110] sm:$0xff]
    %v616 = vld [vmem:[%s13 + $0x118] sm:$0xff]
    %v617 = vld [vmem:[%s13 + $0x120] sm:$0xff]
    %v618 = vld [vmem:[%s13 + $0x128] sm:$0xff]
    %v619 = vld [vmem:[%s13 + $0x130] sm:$0xff]
    %v620 = vld [vmem:[%s13 + $0x138] sm:$0xff]
    %v621 = vld [vmem:[%s13 + $0x140] sm:$0xff]
    %v622 = vld [vmem:[%s13 + $0x148] sm:$0xff]
    %v623 = vld [vmem:[%s13 + $0x150] sm:$0xff]
    %v624 = vld [vmem:[%s13 + $0x158] sm:$0xff]
    %v625 = vld [vmem:[%s13 + $0x160] sm:$0xff]
    %v626 = vld [vmem:[%s13 + $0x168] sm:$0xff]
    %v627 = vld [vmem:[%s13 + $0x170] sm:$0xff]
    %v628 = vld [vmem:[%s13 + $0x178] sm:$0xff]
    %v629 = vld [vmem:[%s14] sm:$0x1]
    %v631 = vperm.slane %v629, 0
    %633 = vmatpush.msra.mxu0 %v596
    %634 = vmatpush.msra.mxu0 %v595
    %635 = vmatpush.msra.mxu0 %v594
    %636 = vmatpush.msra.mxu0 %v593
    %637 = vmatpush.msra.mxu0 %v592
    %638 = vmatpush.msra.mxu0 %v591
    %639 = vmatpush.msra.mxu0 %v590
    %640 = vmatpush.msra.mxu0 %v589
    %641 = vmatpush.msra.mxu0 %v588
    %642 = vmatpush.msra.mxu0 %v587
    %643 = vmatpush.msra.mxu0 %v586
    %644 = vmatpush.msra.mxu0 %v585
    %645 = vmatpush.msra.mxu0 %v584
    %646 = vmatpush.msra.mxu0 %v583
    %647 = vmatpush.msra.mxu0 %v582
    %648 = vmatpush.msra.mxu0 %v581
    %649 = vmatmul.f32.gmra.mxu0 %v578
    %v650 = vpop.f32.mrf.mxu0
    %v651 = vadd.f32 %v631, %v650
    %652 = vdwg.mxu0
    %653 = vmatpush.msra.mxu0 %v612
    %654 = vmatpush.msra.mxu0 %v611
    %655 = vmatpush.msra.mxu0 %v610
    %656 = vmatpush.msra.mxu0 %v609
    %657 = vmatpush.msra.mxu0 %v608
    %658 = vmatpush.msra.mxu0 %v607
    %659 = vmatpush.msra.mxu0 %v606
    %660 = vmatpush.msra.mxu0 %v605
    %661 = vmatpush.msra.mxu0 %v604
    %662 = vmatpush.msra.mxu0 %v603
    %663 = vmatpush.msra.mxu0 %v602
    %664 = vmatpush.msra.mxu0 %v601
    %665 = vmatpush.msra.mxu0 %v600
    %666 = vmatpush.msra.mxu0 %v599
    %667 = vmatpush.msra.mxu0 %v598
    %668 = vmatpush.msra.mxu0 %v597
    %669 = vmatmul.f32.gmra.mxu0 %v579
    %v670 = vpop.f32.mrf.mxu0
    %v671 = vadd.f32 %v651, %v670
    %672 = vdwg.mxu0
    %673 = vmatpush.msra.mxu0 %v628
    %674 = vmatpush.msra.mxu0 %v627
    %675 = vmatpush.msra.mxu0 %v626
    %676 = vmatpush.msra.mxu0 %v625
    %677 = vmatpush.msra.mxu0 %v624
    %678 = vmatpush.msra.mxu0 %v623
    %679 = vmatpush.msra.mxu0 %v622
    %680 = vmatpush.msra.mxu0 %v621
    %681 = vmatpush.msra.mxu0 %v620
    %682 = vmatpush.msra.mxu0 %v619
    %683 = vmatpush.msra.mxu0 %v618
    %684 = vmatpush.msra.mxu0 %v617
    %685 = vmatpush.msra.mxu0 %v616
    %686 = vmatpush.msra.mxu0 %v615
    %687 = vmatpush.msra.mxu0 %v614
    %688 = vmatpush.msra.mxu0 %v613
    %689 = vmatmul.f32.gmra.mxu0 %v580
    %v690 = vpop.f32.mrf.mxu0
    %v691 = vadd.f32 %v671, %v690
    %692 = vdwg.mxu0
    %v693 = vxor.u32 %v691, 2147483648
    %v694 = vmul.f32 %v693, 1.442695
    %v695 = vpow.pop %v694
    %v696 = vadd.f32 %v695, 1.0
    %v697 = vrcp.pop %v696
    %v698 = vmul.f32 %v696, %v697
    %v699 = vsub.f32 1.0, %v698
    %v700 = vmul.f32 %v697, %v699
    %v701 = vadd.f32 %v697, %v700
    %vm702 = vweird.f32 %v696
    %vm703 = vweird.f32 %v697
    %vm704 = vmor %vm702, %vm703
    %v705 = vsel %vm704, %v697, %v701
    %v706 = vand.u32 2147483647, %v696
    %vm707 = vcmp.eq.f32.partialorder %v706, 8.507059e+37
    %v708 = vand.u32 %v696, 2147483648
    %v709 = vor.u32 1.1754944e-38, %v708
    %v710 = vsel %vm707, %v709, %v705
    %v711 = vmul.f32 1.0, %v710
    %vm712 = vcmask 254976
    %713 = vst.msk [vmem:[#allocation8] sm:$0x3] %vm712, %v711
    // Predicated region
    $region66: #{tpu_custom_call.1} parent=1 // pred_check
      _
    $region67: #{tpu_custom_call.1} parent=1 // pred_check_branch
      %715 = sbr.rel (0) target = $region69
    $region68: #{tpu_custom_call.1} parent=1 // pred_region
      %717 = vsyncadd [#allocation4], 0
      %s719 = sshll.u32 [#allocation5], 4
      %s720 = int_to_ptr.vmem [resolvable:$true] %s719
      %s721 = sshll.u32 %s15, 4
      %s722 = int_to_ptr.hbm [resolvable:$true] %s721
      %724 = dma.vmem_to_hbm [thread:$0]  %s720, 32, %s722, [#allocation4]
    $region69: #{tpu_custom_call.1} parent=1 // pred_fallthru
      _
    // Predicated region
    $region70: #{tpu_custom_call.1} parent=1 // pred_check
      _
    $region71: #{tpu_custom_call.1} parent=1 // pred_check_branch
      %726 = sbr.rel (0) target = $region73
    $region72: #{tpu_custom_call.1} parent=1 // pred_region
      %728 = vsyncadd [#allocation7], 0
      %s730 = sshll.u32 [#allocation6], 4
      %s731 = int_to_ptr.vmem [resolvable:$true] %s730
      %s732 = sshll.u32 %s16, 4
      %s733 = int_to_ptr.hbm [resolvable:$true] %s732
      %735 = dma.vmem_to_hbm [thread:$0]  %s731, 64, %s733, [#allocation7]
    $region73: #{tpu_custom_call.1} parent=1 // pred_fallthru
      _
    // Predicated region
    $region74: #{tpu_custom_call.1} parent=1 // pred_check
      _
    $region75: #{tpu_custom_call.1} parent=1 // pred_check_branch
      %737 = sbr.rel (0) target = $region77
    $region76: #{tpu_custom_call.1} parent=1 // pred_region
      %739 = vsyncadd [#allocation7], 0
      %s741 = sshll.u32 [#allocation8], 4
      %s742 = int_to_ptr.vmem [resolvable:$true] %s741
      %s743 = sshll.u32 %s17, 4
      %s744 = int_to_ptr.hbm [resolvable:$true] %s743
      %746 = dma.vmem_to_hbm [thread:$0]  %s742, 32, %s744, [#allocation7]
    $region77: #{tpu_custom_call.1} parent=1 // pred_fallthru
      _
    // Predicated region
    $region78: #{tpu_custom_call.1} parent=1 // pred_check
      _
    $region79: #{tpu_custom_call.1} parent=1 // pred_check_branch
      %748 = sbr.rel (0) target = $region81
    $region80: #{tpu_custom_call.1} parent=1 // pred_region
      %750 = dma.done [#allocation4], 32
    $region81: #{tpu_custom_call.1} parent=1 // pred_fallthru
      _
    // Predicated region
    $region82: #{tpu_custom_call.1} parent=1 // pred_check
      _
    $region83: #{tpu_custom_call.1} parent=1 // pred_check_branch
      %752 = sbr.rel (0) target = $region85
    $region84: #{tpu_custom_call.1} parent=1 // pred_region
      %754 = dma.done [#allocation7], 64
    $region85: #{tpu_custom_call.1} parent=1 // pred_fallthru
      _
    // Predicated region
    $region86: #{tpu_custom_call.1} parent=1 // pred_check
      _
    $region87: #{tpu_custom_call.1} parent=1 // pred_check_branch
      %756 = sbr.rel (0) target = $region89
    $region88: #{tpu_custom_call.1} parent=1 // pred_region
      %758 = dma.done [#allocation7], 32
    $region89: #{tpu_custom_call.1} parent=1 // pred_fallthru
      _
    %759 = vsyncpa [#allocation3], 1
    %760 = vsyncpa [#allocation4], 1
    %761 = vsyncpa [#allocation7], 1

</llo_original>
